<compile_context>
chip_gen: v7x
topology: tpu7x:2x2x1
jax: 0.10.0
libtpu: 0.0.40
codegen_flags: <defaults>
</compile_context>

<pallas_src>
import jax
import jax.numpy as jnp
from jax.experimental import pallas as pl
from jax.experimental.pallas import tpu as pltpu


def _round_up(x, m):
    return (x + m - 1) // m * m


def _make_kernel(B, C, B_tile, N_tile):
    """Kernel with static batch size B, class count C, batch tile B_tile, token tile N_tile."""

    def kernel(tok_ref, st_ref, en_ref, inv_ref, lab_ref, w_ref, b_ref,
               logits_ref, loss_ref, acc_ref):
        # All grid queries at top level (NOT inside pl.when bodies).
        i = pl.program_id(0)          # batch tile
        t = pl.program_id(1)          # token tile (reduction axis)
        nt = pl.num_programs(1)

        @pl.when(t == 0)
        def _init():
            acc_ref[...] = jnp.zeros_like(acc_ref)

        # Bag-membership mask for this token tile: row b covers tokens [start_b, end_b).
        tok = t * N_tile + jax.lax.broadcasted_iota(jnp.int32, (B_tile, N_tile), 1)
        mask = (tok >= st_ref[...]) & (tok < en_ref[...])          # (B_tile, N_tile) bool

        # Sum pooling on the MXU: (B_tile, N_tile) bf16 0/1 @ (N_tile, D) bf16 -> f32 accumulate.
        acc_ref[...] += jnp.dot(mask.astype(jnp.bfloat16), tok_ref[...],
                                preferred_element_type=jnp.float32)

        @pl.when(t == nt - 1)
        def _finalize():
            # Mean normalization in f32 (exact per-row 1/count), then the Linear layer.
            embedded = acc_ref[...] * inv_ref[...]                  # (B_tile, D) f32
            logits = jnp.dot(embedded.astype(jnp.bfloat16), w_ref[...],
                             preferred_element_type=jnp.float32) + b_ref[...]
            logits_ref[...] = logits                                # lane-dense (B_tile, 128)

            # Cross-entropy (f32); padded class lanes masked to -inf for the log-sum-exp.
            col = jax.lax.broadcasted_iota(jnp.int32, logits.shape, 1)
            masked = jnp.where(col < C, logits, -jnp.inf)
            m = jnp.max(masked, axis=-1, keepdims=True)
            lse = m + jnp.log(jnp.sum(jnp.exp(masked - m), axis=-1, keepdims=True))

            # Pick the label logit per row (int32 labels, no one-hot input).
            picked = jnp.sum(jnp.where(col == lab_ref[...], logits, 0.0),
                             axis=-1, keepdims=True)                # (B_tile, 1)

            # Only real batch rows contribute.
            row = jax.lax.broadcasted_iota(jnp.int32, (logits.shape[0], 1), 0)
            valid = (row + i * B_tile) < B
            loss_ref[...] = jnp.where(valid, lse - picked, 0.0)     # (B_tile, 1)

    return kernel


def text_classification_forward(text, labels, offsets, emb_table, fc_w, fc_b,
                                *, n_tile=4096):
    """text: (N,) int32 token ids; labels: (B,) int32; offsets: (B,) int32 (sorted, offsets[0]==0).

    Returns {'logits': (B, C), 'loss': scalar}, matching the PyTorch module's forward.
    """
    V, D = emb_table.shape
    C = fc_w.shape[0]
    N = text.shape[0]
    B = offsets.shape[0]

    # ---- padded / tiled geometry -------------------------------------------------
    C_pad = _round_up(C, 128)                 # lane-dense logits
    D_pad = _round_up(D, 8)                   # do NOT pad to 128: token stream dominates HBM
    B_tile = min(_round_up(B, 8), 256)        # 256 fills the 256-wide MXU M dim on v6e/v7x
    B_pad = _round_up(B, B_tile)
    nb = B_pad // B_tile
    if nb == 1 and B_tile >= 16 and B_tile % 16 == 0:
        # Guarantee >=2 tiles on the "parallel" axis so v7x's second TensorCore gets work.
        B_tile //= 2
        nb = 2
    N_tile = _round_up(min(n_tile, N), 128)   # per-step token payload; multiple of 128
    N_pad = _round_up(N, N_tile)
    nt = N_pad // N_tile

    # ---- glue (plain JAX): gather only the used embedding rows --------------------
    # (contract: offsets sorted with offsets[0]==0, same as torch.nn.EmbeddingBag)
    tok_emb = jnp.zeros((N_pad, D_pad), jnp.bfloat16)
    tok_emb = tok_emb.at[:N, :D].set(emb_table[text].astype(jnp.bfloat16))

    starts = offsets.astype(jnp.int32)
    ends = jnp.concatenate([starts[1:], jnp.array([N], jnp.int32)])
    counts = jnp.maximum((ends - starts).astype(jnp.float32), 1.0)   # empty bag -> zero row

    starts_pad = jnp.zeros((B_pad, 1), jnp.int32).at[:B, 0].set(starts)
    ends_pad = jnp.zeros((B_pad, 1), jnp.int32).at[:B, 0].set(ends)
    inv_pad = jnp.ones((B_pad, 1), jnp.float32).at[:B, 0].set(1.0 / counts)
    lab_pad = jnp.zeros((B_pad, 1), jnp.int32).at[:B, 0].set(labels.astype(jnp.int32))

    w_pad = jnp.zeros((D_pad, C_pad), jnp.bfloat16).at[:D, :C].set(fc_w.T.astype(jnp.bfloat16))
    b_pad = jnp.zeros((1, C_pad), jnp.float32).at[0, :C].set(fc_b.astype(jnp.float32))

    kernel = _make_kernel(B, C, B_tile, N_tile)

    cost = pl.CostEstimate(
        flops=2 * B_pad * N_pad * D_pad + 2 * B_pad * D_pad * C_pad,
        transcendentals=B_pad * C_pad + B_pad,
        bytes_accessed=(nb * N_pad * D_pad * 2            # token stream, re-read per batch tile
                        + 4 * B_pad * 4                    # starts / ends / inv_counts / labels
                        + D_pad * C_pad * 2 + C_pad * 4    # fc weight (bf16) / bias (f32)
                        + B_pad * C_pad * 4 + B_pad * 4),  # logits out + per-row loss out
    )

    logits_pad, loss_rows = pl.pallas_call(
        kernel,
        out_shape=(
            jax.ShapeDtypeStruct((B_pad, C_pad), jnp.float32),   # lane-dense logits
            jax.ShapeDtypeStruct((B_pad, 1), jnp.float32),       # per-row loss terms
        ),
        grid_spec=pltpu.PrefetchScalarGridSpec(
            num_scalar_prefetch=0,
            grid=(nb, nt),                                       # (batch tiles, token tiles)
            in_specs=[
                pl.BlockSpec((N_tile, D_pad), lambda i, t: (t, 0)),   # gathered token embeddings
                pl.BlockSpec((B_tile, 1), lambda i, t: (i, 0)),       # bag starts (int32)
                pl.BlockSpec((B_tile, 1), lambda i, t: (i, 0)),       # bag ends (int32)
                pl.BlockSpec((B_tile, 1), lambda i, t: (i, 0)),       # 1/bag_count (f32)
                pl.BlockSpec((B_tile, 1), lambda i, t: (i, 0)),       # labels (int32)
                pl.BlockSpec((D_pad, C_pad), lambda i, t: (0, 0)),    # fc weight^T (bf16)
                pl.BlockSpec((1, C_pad), lambda i, t: (0, 0)),        # fc bias (f32)
            ],
            out_specs=(
                pl.BlockSpec((B_tile, C_pad), lambda i, t: (i, 0)),   # logits
                pl.BlockSpec((B_tile, 1), lambda i, t: (i, 0)),       # per-row loss
            ),
            scratch_shapes=[pltpu.VMEM((B_tile, D_pad), jnp.float32)],  # pooled-sum accumulator
        ),
        compiler_params=pltpu.CompilerParams(
            dimension_semantics=("parallel", "arbitrary"),
            vmem_limit_bytes=32 * 1024 * 1024,
        ),
        cost_estimate=cost,
    )(tok_emb, starts_pad, ends_pad, inv_pad, lab_pad, w_pad, b_pad)

    logits = logits_pad[:B, :C]
    loss = jnp.sum(loss_rows[:B, 0]) / jnp.float32(B)
    return {'logits': logits, 'loss': loss}


def _reference_forward(text, labels, offsets, emb_table, fc_w, fc_b):
    """Pure-JAX f32 reference mirroring the PyTorch module (for a sanity check)."""
    N = text.shape[0]
    ends = jnp.concatenate([offsets[1:], jnp.array([N], jnp.int32)])
    counts = jnp.maximum((ends - offsets).astype(jnp.float32), 1.0)
    tok = jnp.arange(N)[None, :]
    in_bag = (tok >= offsets[:, None]) & (tok < ends[:, None])
    pooled = (in_bag.astype(jnp.float32) @ emb_table[text]) / counts[:, None]
    logits = pooled @ fc_w.T + fc_b
    m = jnp.max(logits, axis=-1, keepdims=True)
    lse = m + jnp.log(jnp.sum(jnp.exp(logits - m), axis=-1, keepdims=True))
    picked = jnp.take_along_axis(logits, labels[:, None], axis=-1)
    return logits, jnp.mean(lse - picked)


if __name__ == "__main__":
    # Small synthetic config consistent with the module's __init__.
    vocab_size = 64
    embed_dim = 32
    num_class = 8
    batch = 4
    n_tokens = 16

    key = jax.random.PRNGKey(0)
    k_emb, k_fc, k_text, k_lab = jax.random.split(key, 4)

    # init_weights(): uniform(-0.5, 0.5) for embedding and fc weight, zero bias.
    initrange = 0.5
    emb_table = jax.random.uniform(k_emb, (vocab_size, embed_dim),
                                   minval=-initrange, maxval=initrange,
                                   dtype=jnp.float32)
    fc_w = jax.random.uniform(k_fc, (num_class, embed_dim),
                              minval=-initrange, maxval=initrange,
                              dtype=jnp.float32)
    fc_b = jnp.zeros((num_class,), jnp.float32)

    # Deterministic example inputs: flat token stream with bag offsets.
    text = jax.random.randint(k_text, (n_tokens,), 0, vocab_size, dtype=jnp.int32)
    labels = jax.random.randint(k_lab, (batch,), 0, num_class, dtype=jnp.int32)
    offsets = jnp.array([0, 4, 9, 12], dtype=jnp.int32)  # bags of len 4, 5, 3, 4

    out = text_classification_forward(text, labels, offsets, emb_table, fc_w, fc_b)
    jax.block_until_ready(out)

    assert out['logits'].shape == (batch, num_class)
    assert out['loss'].shape == ()
    assert bool(jnp.isfinite(out['loss']))

    # Loose-tolerance check vs. f32 reference (kernel feeds bf16 operands to the MXU).
    ref_logits, ref_loss = _reference_forward(text, labels, offsets, emb_table, fc_w, fc_b)
    assert float(jnp.max(jnp.abs(out['logits'] - ref_logits))) < 0.1
    assert abs(float(out['loss'] - ref_loss)) < 0.1

    print("KERNEL_OK")
</pallas_src>

<mosaic_0001>
module attributes {stable_mosaic.version = 11 : i64} {
  func.func @kernel(%arg0: i32, %arg1: i32, %arg2: memref<128x32xbf16, #tpu.memory_space<vmem>>, %arg3: memref<8x1xi32, #tpu.memory_space<vmem>>, %arg4: memref<8x1xi32, #tpu.memory_space<vmem>>, %arg5: memref<8x1xf32, #tpu.memory_space<vmem>>, %arg6: memref<8x1xi32, #tpu.memory_space<vmem>>, %arg7: memref<32x128xbf16, #tpu.memory_space<vmem>>, %arg8: memref<1x128xf32, #tpu.memory_space<vmem>>, %arg9: memref<8x128xf32, #tpu.memory_space<vmem>>, %arg10: memref<8x1xf32, #tpu.memory_space<vmem>>, %arg11: memref<8x32xf32, #tpu.memory_space<vmem>>) attributes {dimension_semantics = [#tpu.dimension_semantics<parallel>, #tpu.dimension_semantics<arbitrary>], iteration_bounds = array<i64: 1, 1>, scalar_prefetch = 0 : i64, scratch_operands = 1 : i64, tpu.core_type = #tpu.core_type<tc>, window_params = [{transform_indices = @transform_0, window_bounds = array<i64: 128, 32>}, {transform_indices = @transform_1, window_bounds = array<i64: 8, 1>}, {transform_indices = @transform_2, window_bounds = array<i64: 8, 1>}, {transform_indices = @transform_3, window_bounds = array<i64: 8, 1>}, {transform_indices = @transform_4, window_bounds = array<i64: 8, 1>}, {pipeline_mode = #tpu.pipeline_mode<synchronous>, transform_indices = @transform_5, window_bounds = array<i64: 32, 128>}, {pipeline_mode = #tpu.pipeline_mode<synchronous>, transform_indices = @transform_6, window_bounds = array<i64: 1, 128>}, {transform_indices = @transform_7, window_bounds = array<i64: 8, 128>}, {transform_indices = @transform_8, window_bounds = array<i64: 8, 1>}]} {
    %c0_i32 = arith.constant 0 : i32
    %0 = arith.cmpi eq, %arg1, %c0_i32 : i32
    %1 = arith.extui %0 : i1 to i32
    %c0_i32_0 = arith.constant 0 : i32
    %2 = arith.cmpi ne, %1, %c0_i32_0 : i32
    scf.if %2 {
      %cst_12 = arith.constant 0.000000e+00 : f32
      %25 = vector.broadcast %cst_12 : f32 to vector<8x32xf32>
      %c0_13 = arith.constant 0 : index
      %c0_14 = arith.constant 0 : index
      %26 = vector.load %arg11[%c0_13, %c0_14] : memref<8x32xf32, #tpu.memory_space<vmem>>, vector<8x32xf32>
      tpu.vector_store %arg11[%c0_13, %c0_14], %25 {strides = array<i32>} : memref<8x32xf32, #tpu.memory_space<vmem>>, vector<8x32xf32>,
    } else {
    }
    %c128_i32 = arith.constant 128 : i32
    %3 = arith.muli %arg1, %c128_i32 : i32
    %4 = tpu.iota {dimensions = array<i32: 1>} : vector<8x128xi32>
    %5 = vector.broadcast %3 : i32 to vector<8x128xi32>
    %6 = arith.addi %5, %4 : vector<8x128xi32>
    %c0 = arith.constant 0 : index
    %c0_1 = arith.constant 0 : index
    %7 = vector.load %arg3[%c0, %c0_1] : memref<8x1xi32, #tpu.memory_space<vmem>>, vector<8x1xi32>
    %8 = vector.broadcast %7 : vector<8x1xi32> to vector<8x128xi32>
    %9 = arith.cmpi sge, %6, %8 : vector<8x128xi32>
    %c0_2 = arith.constant 0 : index
    %c0_3 = arith.constant 0 : index
    %10 = vector.load %arg4[%c0_2, %c0_3] : memref<8x1xi32, #tpu.memory_space<vmem>>, vector<8x1xi32>
    %11 = vector.broadcast %10 : vector<8x1xi32> to vector<8x128xi32>
    %12 = arith.cmpi slt, %6, %11 : vector<8x128xi32>
    %13 = arith.andi %9, %12 : vector<8x128xi1>
    %c0_4 = arith.constant 0 : index
    %c0_5 = arith.constant 0 : index
    %14 = vector.load %arg11[%c0_4, %c0_5] : memref<8x32xf32, #tpu.memory_space<vmem>>, vector<8x32xf32>
    %15 = arith.extui %13 : vector<8x128xi1> to vector<8x128xi32>
    %16 = arith.sitofp %15 : vector<8x128xi32> to vector<8x128xf32>
    %17 = arith.truncf %16 : vector<8x128xf32> to vector<8x128xbf16>
    %c0_6 = arith.constant 0 : index
    %c0_7 = arith.constant 0 : index
    %18 = vector.load %arg2[%c0_6, %c0_7] : memref<128x32xbf16, #tpu.memory_space<vmem>>, vector<128x32xbf16>
    %cst = arith.constant dense<0.000000e+00> : vector<8x32xf32>
    %19 = tpu.matmul %17, %18, %cst {dimension_numbers = #tpu.dot_dimension_numbers<[1], [0], [0], [1], [0, 0, 1, 1], [], []>} : vector<8x128xbf16>, vector<128x32xbf16>, vector<8x32xf32> -> vector<8x32xf32>
    %20 = arith.addf %14, %19 : vector<8x32xf32>
    %c0_8 = arith.constant 0 : index
    %c0_9 = arith.constant 0 : index
    %21 = vector.load %arg11[%c0_8, %c0_9] : memref<8x32xf32, #tpu.memory_space<vmem>>, vector<8x32xf32>
    tpu.vector_store %arg11[%c0_8, %c0_9], %20 {strides = array<i32>} : memref<8x32xf32, #tpu.memory_space<vmem>>, vector<8x32xf32>,
    %c0_i32_10 = arith.constant 0 : i32
    %22 = arith.cmpi eq, %arg1, %c0_i32_10 : i32
    %23 = arith.extui %22 : i1 to i32
    %c0_i32_11 = arith.constant 0 : i32
    %24 = arith.cmpi ne, %23, %c0_i32_11 : i32
    scf.if %24 {
      %c0_12 = arith.constant 0 : index
      %c0_13 = arith.constant 0 : index
      %25 = vector.load %arg11[%c0_12, %c0_13] : memref<8x32xf32, #tpu.memory_space<vmem>>, vector<8x32xf32>
      %c0_14 = arith.constant 0 : index
      %c0_15 = arith.constant 0 : index
      %26 = vector.load %arg5[%c0_14, %c0_15] : memref<8x1xf32, #tpu.memory_space<vmem>>, vector<8x1xf32>
      %27 = vector.broadcast %26 : vector<8x1xf32> to vector<8x32xf32>
      %28 = arith.mulf %25, %27 : vector<8x32xf32>
      %29 = arith.truncf %28 : vector<8x32xf32> to vector<8x32xbf16>
      %c0_16 = arith.constant 0 : index
      %c0_17 = arith.constant 0 : index
      %30 = vector.load %arg7[%c0_16, %c0_17] : memref<32x128xbf16, #tpu.memory_space<vmem>>, vector<32x128xbf16>
      %cst_18 = arith.constant dense<0.000000e+00> : vector<8x128xf32>
      %31 = tpu.matmul %29, %30, %cst_18 {dimension_numbers = #tpu.dot_dimension_numbers<[1], [0], [0], [1], [0, 0, 1, 1], [], []>} : vector<8x32xbf16>, vector<32x128xbf16>, vector<8x128xf32> -> vector<8x128xf32>
      %c0_19 = arith.constant 0 : index
      %c0_20 = arith.constant 0 : index
      %32 = vector.load %arg8[%c0_19, %c0_20] : memref<1x128xf32, #tpu.memory_space<vmem>>, vector<1x128xf32>
      %33 = vector.broadcast %32 : vector<1x128xf32> to vector<8x128xf32>
      %34 = arith.addf %31, %33 : vector<8x128xf32>
      %c0_21 = arith.constant 0 : index
      %c0_22 = arith.constant 0 : index
      %35 = vector.load %arg9[%c0_21, %c0_22] : memref<8x128xf32, #tpu.memory_space<vmem>>, vector<8x128xf32>
      tpu.vector_store %arg9[%c0_21, %c0_22], %34 {strides = array<i32>} : memref<8x128xf32, #tpu.memory_space<vmem>>, vector<8x128xf32>,
      %36 = tpu.iota {dimensions = array<i32: 1>} : vector<8x128xi32>
      %c8_i32 = arith.constant 8 : i32
      %37 = vector.broadcast %c8_i32 : i32 to vector<8x128xi32>
      %38 = arith.cmpi slt, %36, %37 : vector<8x128xi32>
      %cst_23 = arith.constant 0xFF800000 : f32
      %39 = vector.broadcast %cst_23 : f32 to vector<8x128xf32>
      %40 = arith.select %38, %34, %39 : vector<8x128xi1>, vector<8x128xf32>
      %cst_24 = arith.constant dense<0xFF800000> : vector<8xf32>
      %41 = vector.multi_reduction <maximumf>, %40, %cst_24 [1] : vector<8x128xf32> to vector<8xf32>
      %42 = vector.shape_cast %41 : vector<8xf32> to vector<8x1xf32>
      %43 = vector.broadcast %42 : vector<8x1xf32> to vector<8x128xf32>
      %44 = arith.subf %40, %43 : vector<8x128xf32>
      %45 = math.exp %44 : vector<8x128xf32>
      %cst_25 = arith.constant dense<0.000000e+00> : vector<8xf32>
      %46 = vector.multi_reduction <add>, %45, %cst_25 [1] : vector<8x128xf32> to vector<8xf32>
      %47 = vector.shape_cast %46 : vector<8xf32> to vector<8x1xf32>
      %48 = math.log %47 : vector<8x1xf32>
      %49 = arith.addf %42, %48 : vector<8x1xf32>
      %c0_26 = arith.constant 0 : index
      %c0_27 = arith.constant 0 : index
      %50 = vector.load %arg6[%c0_26, %c0_27] : memref<8x1xi32, #tpu.memory_space<vmem>>, vector<8x1xi32>
      %51 = vector.broadcast %50 : vector<8x1xi32> to vector<8x128xi32>
      %52 = arith.cmpi eq, %36, %51 : vector<8x128xi32>
      %cst_28 = arith.constant 0.000000e+00 : f32
      %53 = vector.broadcast %cst_28 : f32 to vector<8x128xf32>
      %54 = arith.select %52, %34, %53 : vector<8x128xi1>, vector<8x128xf32>
      %cst_29 = arith.constant dense<0.000000e+00> : vector<8xf32>
      %55 = vector.multi_reduction <add>, %54, %cst_29 [1] : vector<8x128xf32> to vector<8xf32>
      %56 = vector.shape_cast %55 : vector<8xf32> to vector<8x1xf32>
      %57 = tpu.iota {dimensions = array<i32: 0>} : vector<8x1xi32>
      %c8_i32_30 = arith.constant 8 : i32
      %58 = arith.muli %arg0, %c8_i32_30 : i32
      %59 = vector.broadcast %58 : i32 to vector<8x1xi32>
      %60 = arith.addi %57, %59 : vector<8x1xi32>
      %c4_i32 = arith.constant 4 : i32
      %61 = vector.broadcast %c4_i32 : i32 to vector<8x1xi32>
      %62 = arith.cmpi slt, %60, %61 : vector<8x1xi32>
      %63 = arith.subf %49, %56 : vector<8x1xf32>
      %cst_31 = arith.constant 0.000000e+00 : f32
      %64 = vector.broadcast %cst_31 : f32 to vector<8x1xf32>
      %65 = arith.select %62, %63, %64 : vector<8x1xi1>, vector<8x1xf32>
      %c0_32 = arith.constant 0 : index
      %c0_33 = arith.constant 0 : index
      %66 = vector.load %arg10[%c0_32, %c0_33] : memref<8x1xf32, #tpu.memory_space<vmem>>, vector<8x1xf32>
      tpu.vector_store %arg10[%c0_32, %c0_33], %65 {strides = array<i32>} : memref<8x1xf32, #tpu.memory_space<vmem>>, vector<8x1xf32>,
    } else {
    }
    return
  }
  func.func @transform_0(%arg0: i32, %arg1: i32) -> (i32, i32) {
    %c0_i32 = arith.constant 0 : i32
    %c0_i32_0 = arith.constant 0 : i32
    return %arg1, %c0_i32 : i32, i32
  }
  func.func @transform_1(%arg0: i32, %arg1: i32) -> (i32, i32) {
    %c0_i32 = arith.constant 0 : i32
    %c0_i32_0 = arith.constant 0 : i32
    return %arg0, %c0_i32 : i32, i32
  }
  func.func @transform_2(%arg0: i32, %arg1: i32) -> (i32, i32) {
    %c0_i32 = arith.constant 0 : i32
    %c0_i32_0 = arith.constant 0 : i32
    return %arg0, %c0_i32 : i32, i32
  }
  func.func @transform_3(%arg0: i32, %arg1: i32) -> (i32, i32) {
    %c0_i32 = arith.constant 0 : i32
    %c0_i32_0 = arith.constant 0 : i32
    return %arg0, %c0_i32 : i32, i32
  }
  func.func @transform_4(%arg0: i32, %arg1: i32) -> (i32, i32) {
    %c0_i32 = arith.constant 0 : i32
    %c0_i32_0 = arith.constant 0 : i32
    return %arg0, %c0_i32 : i32, i32
  }
  func.func @transform_5(%arg0: i32, %arg1: i32) -> (i32, i32) {
    %c0_i32 = arith.constant 0 : i32
    %c0_i32_0 = arith.constant 0 : i32
    %c0_i32_1 = arith.constant 0 : i32
    return %c0_i32, %c0_i32_0 : i32, i32
  }
  func.func @transform_6(%arg0: i32, %arg1: i32) -> (i32, i32) {
    %c0_i32 = arith.constant 0 : i32
    %c0_i32_0 = arith.constant 0 : i32
    %c0_i32_1 = arith.constant 0 : i32
    return %c0_i32, %c0_i32_0 : i32, i32
  }
  func.func @transform_7(%arg0: i32, %arg1: i32) -> (i32, i32) {
    %c0_i32 = arith.constant 0 : i32
    %c0_i32_0 = arith.constant 0 : i32
    return %arg0, %c0_i32 : i32, i32
  }
  func.func @transform_8(%arg0: i32, %arg1: i32) -> (i32, i32) {
    %c0_i32 = arith.constant 0 : i32
    %c0_i32_0 = arith.constant 0 : i32
    return %arg0, %c0_i32 : i32, i32
  }
}

</mosaic_0001>

<llo_original>
// kernel: tpu_custom_call.1
$region0: #{tpu_custom_call.1}
  #allocation0 [shape = 'u32[]', space=smem, size = 0x4, offset = 0x4, fixed_abs, tag = 'smem constant byte address 0x4 - core index']
  #allocation1 [shape = 'u32[144,128]{1,0:T(1,128)}', space=vmem, size = 0x12000, scoped, tag = 'internal scratch']
  #allocation2 [shape = 'f32[8,32]{1,0:T(8,128)}', space=vmem, size = 0x1000, scoped, tag = 'scratch operand']
  %s0 = inlined_call_operand.vmem [shape: bf16[128,32], index: 0, kind: input, shape index: {}]
  %s1 = inlined_call_operand.vmem [shape: s32[8,1], index: 1, kind: input, shape index: {}]
  %s2 = inlined_call_operand.vmem [shape: s32[8,1], index: 2, kind: input, shape index: {}]
  %s3 = inlined_call_operand.vmem [shape: f32[8,1], index: 3, kind: input, shape index: {}]
  %s4 = inlined_call_operand.vmem [shape: s32[8,1], index: 4, kind: input, shape index: {}]
  %s5 = inlined_call_operand.vmem [shape: bf16[32,128], index: 5, kind: input, shape index: {}]
  %s6 = inlined_call_operand.vmem [shape: f32[1,128], index: 6, kind: input, shape index: {}]
  %s7 = inlined_call_operand.hbm [shape: f32[8,128], index: 7, kind: output, shape index: {0}]
  %s8 = inlined_call_operand.vmem [shape: f32[8,1], index: 8, kind: output, shape index: {1}]
  %9 = xla_tuple %s7, %s8
  %s10 = sld [smem:[#allocation0]]
  $region54: #{tpu_custom_call.1} parent=0
    _
  %s12 = ssub.s32 1, %s10
  %s13 = scalar_select 0, %s12, %s10
  $region1: #{tpu_custom_call.1} parent=0
    #allocation3 [shape = 'u8[4096]{0}', space=vmem, size = 0x1000, scoped, tag = 'output window, operand 0, single buffered']
    #allocation4 [shape = 's32[1]{0}', space=sflag, size = 0x4, scoped, tag = 'scoped memory for tpu_custom_call.1']
    %14 = vsyncpa [#allocation4], 0
    // Predicated region
    $region2: #{tpu_custom_call.1} parent=1 // pred_check
      _
    $region3: #{tpu_custom_call.1} parent=1 // pred_check_branch
      %16 = sbr.rel (0) target = $region5
    $region4: #{tpu_custom_call.1} parent=1 // pred_region
      _
    $region5: #{tpu_custom_call.1} parent=1 // pred_fallthru
      _
    // Predicated region
    $region6: #{tpu_custom_call.1} parent=1 // pred_check
      _
    $region7: #{tpu_custom_call.1} parent=1 // pred_check_branch
      %18 = sbr.rel (0) target = $region9
    $region8: #{tpu_custom_call.1} parent=1 // pred_region
      _
    $region9: #{tpu_custom_call.1} parent=1 // pred_fallthru
      _
    // Predicated region
    $region10: #{tpu_custom_call.1} parent=1 // pred_check
      _
    $region11: #{tpu_custom_call.1} parent=1 // pred_check_branch
      %20 = sbr.rel (0) target = $region13
    $region12: #{tpu_custom_call.1} parent=1 // pred_region
      _
    $region13: #{tpu_custom_call.1} parent=1 // pred_fallthru
      _
    // Predicated region
    $region14: #{tpu_custom_call.1} parent=1 // pred_check
      _
    $region15: #{tpu_custom_call.1} parent=1 // pred_check_branch
      %22 = sbr.rel (0) target = $region17
    $region16: #{tpu_custom_call.1} parent=1 // pred_region
      _
    $region17: #{tpu_custom_call.1} parent=1 // pred_fallthru
      _
    // Predicated region
    $region18: #{tpu_custom_call.1} parent=1 // pred_check
      _
    $region19: #{tpu_custom_call.1} parent=1 // pred_check_branch
      %24 = sbr.rel (0) target = $region21
    $region20: #{tpu_custom_call.1} parent=1 // pred_region
      _
    $region21: #{tpu_custom_call.1} parent=1 // pred_fallthru
      _
    // Predicated region
    $region22: #{tpu_custom_call.1} parent=1 // pred_check
      _
    $region23: #{tpu_custom_call.1} parent=1 // pred_check_branch
      %26 = sbr.rel (0) target = $region25
    $region24: #{tpu_custom_call.1} parent=1 // pred_region
      _
    $region25: #{tpu_custom_call.1} parent=1 // pred_fallthru
      _
    // Predicated region
    $region26: #{tpu_custom_call.1} parent=1 // pred_check
      _
    $region27: #{tpu_custom_call.1} parent=1 // pred_check_branch
      %28 = sbr.rel (0) target = $region29
    $region28: #{tpu_custom_call.1} parent=1 // pred_region
      _
    $region29: #{tpu_custom_call.1} parent=1 // pred_fallthru
      _
    %p30 = scmp.eq.s32.totalorder 0, 0
    // Predicated region
    $region30: #{tpu_custom_call.1} parent=1 // pred_check
      %p31 = pneg %p30
    $region31: #{tpu_custom_call.1} parent=1 // pred_check_branch
      %33 = sbr.rel (%p31) target = $region33
    $region32: #{tpu_custom_call.1} parent=1 // pred_region
      %vm34 = vcmask 261120
      %35 = vst.msk [vmem:[#allocation2] sm:$0xff] %vm34, 0.0
    $region33: #{tpu_custom_call.1} parent=1 // pred_fallthru
      _
    %s36 = smul.u32 0, 128
    %v37 = vlaneseq
    %v38 = vand.u32 %v37, 127
    %v39 = vstv %s36
    %v40 = vadd.s32 %v39, %v38
    %v41 = vld [vmem:[%s1] sm:$0xff]
    %42 = vset.pattern.permute.xlu0 0
    %43 = vperm.xlu0 %42, %v41
    %v44 = vpop.permute.xlu0 %43
    %vm45 = vcmp.ge.s32.totalorder %v40, %v44
    %v46 = vld [vmem:[%s2] sm:$0xff]
    %47 = vset.pattern.permute.xlu0 0
    %48 = vperm.xlu0 %47, %v46
    %v49 = vpop.permute.xlu0 %48
    %vm50 = vcmp.lt.s32.totalorder %v40, %v49
    %vm51 = vmand %vm45, %vm50
    %v52 = vld [vmem:[#allocation2] sm:$0xff]
    %v53 = vsel %vm51, 1, 0
    %v54 = vcvt.s32.f32 %v53
    %v55 = vpack.c.bf16 %v54, %v54
    %v56 = vld [vmem:[%s0] sm:$0xf]
    %v57 = vld [vmem:[%s0 + $0x4] sm:$0xf]
    %v58 = vld [vmem:[%s0 + $0x8] sm:$0xf]
    %v59 = vld [vmem:[%s0 + $0xc] sm:$0xf]
    %v60 = vld [vmem:[%s0 + $0x10] sm:$0xf]
    %v61 = vld [vmem:[%s0 + $0x14] sm:$0xf]
    %v62 = vld [vmem:[%s0 + $0x18] sm:$0xf]
    %v63 = vld [vmem:[%s0 + $0x1c] sm:$0xf]
    %v64 = vld [vmem:[%s0 + $0x20] sm:$0xf]
    %v65 = vld [vmem:[%s0 + $0x24] sm:$0xf]
    %v66 = vld [vmem:[%s0 + $0x28] sm:$0xf]
    %v67 = vld [vmem:[%s0 + $0x2c] sm:$0xf]
    %v68 = vld [vmem:[%s0 + $0x30] sm:$0xf]
    %v69 = vld [vmem:[%s0 + $0x34] sm:$0xf]
    %v70 = vld [vmem:[%s0 + $0x38] sm:$0xf]
    %v71 = vld [vmem:[%s0 + $0x3c] sm:$0xf]
    %v88 = vunpack.c.l.b16 %v56
    %v89 = vunpack.c.l.b16 %v57
    %v90 = vunpack.c.l.b16 %v58
    %v91 = vunpack.c.l.b16 %v59
    %v92 = vunpack.c.l.b16 %v60
    %v93 = vunpack.c.l.b16 %v61
    %v94 = vunpack.c.l.b16 %v62
    %v95 = vunpack.c.l.b16 %v63
    %v96 = vunpack.c.l.b16 %v64
    %v97 = vunpack.c.l.b16 %v65
    %v98 = vunpack.c.l.b16 %v66
    %v99 = vunpack.c.l.b16 %v67
    %v100 = vunpack.c.l.b16 %v68
    %v101 = vunpack.c.l.b16 %v69
    %v102 = vunpack.c.l.b16 %v70
    %v103 = vunpack.c.l.b16 %v71
    %v104 = vpack.c.b16 %v89, %v88
    %v105 = vpack.c.b16 %v91, %v90
    %v106 = vpack.c.b16 %v93, %v92
    %v107 = vpack.c.b16 %v95, %v94
    %v108 = vpack.c.b16 %v97, %v96
    %v109 = vpack.c.b16 %v99, %v98
    %v110 = vpack.c.b16 %v101, %v100
    %v111 = vpack.c.b16 %v103, %v102
    %120 = vmatprep.subr.bf16.mxu0 0
    %121 = vmatpush1.bf16.msra.mxu0 %v104
    %122 = vmatprep.subr.bf16.mxu0 0
    %123 = vmatpush1.bf16.msra.mxu0 %v105
    %124 = vmatprep.subr.bf16.mxu0 0
    %125 = vmatpush1.bf16.msra.mxu0 %v106
    %126 = vmatprep.subr.bf16.mxu0 0
    %127 = vmatpush1.bf16.msra.mxu0 %v107
    %128 = vmatprep.subr.bf16.mxu0 0
    %129 = vmatpush1.bf16.msra.mxu0 %v108
    %130 = vmatprep.subr.bf16.mxu0 0
    %131 = vmatpush1.bf16.msra.mxu0 %v109
    %132 = vmatprep.subr.bf16.mxu0 0
    %133 = vmatpush1.bf16.msra.mxu0 %v110
    %134 = vmatprep.subr.bf16.mxu0 0
    %135 = vmatpush1.bf16.msra.mxu0 %v111
    %136 = vmatprep.subr.bf16.mxu0 0
    %137 = vmatpush1.bf16.msra.mxu0 0
    %138 = vmatprep.subr.bf16.mxu0 0
    %139 = vmatpush1.bf16.msra.mxu0 0
    %140 = vmatprep.subr.bf16.mxu0 0
    %141 = vmatpush1.bf16.msra.mxu0 0
    %142 = vmatprep.subr.bf16.mxu0 0
    %143 = vmatpush1.bf16.msra.mxu0 0
    %144 = vmatprep.subr.bf16.mxu0 0
    %145 = vmatpush1.bf16.msra.mxu0 0
    %146 = vmatprep.subr.bf16.mxu0 0
    %147 = vmatpush1.bf16.msra.mxu0 0
    %148 = vmatprep.subr.bf16.mxu0 0
    %149 = vmatpush1.bf16.msra.mxu0 0
    %150 = vmatprep.subr.bf16.mxu0 0
    %151 = vmatpush1.bf16.msra.mxu0 0
    %152 = vmatprep.mubr.bf16.mxu0 0
    %153 = vmatmul.mubr.bf16.gmra.mrb[0].mxu0 %v55
    %v154 = vpop.f32.mrb[0].mxu0
    %v155 = vadd.f32 0.0, %v154
    %v156 = vpop.f32.mrb[0].mxu0
    %v157 = vpop.f32.mrb[0].mxu0
    %v158 = vpop.f32.mrb[0].mxu0
    %159 = vdwg.mxu0
    %v160 = vadd.f32 %v52, %v155
    %vm161 = vcmask 261120
    %162 = vst.msk [vmem:[#allocation2] sm:$0xff] %vm161, %v160
    // Predicated region
    $region34: #{tpu_custom_call.1} parent=1 // pred_check
      %p163 = pneg %p30
    $region35: #{tpu_custom_call.1} parent=1 // pred_check_branch
      %165 = sbr.rel (%p163) target = $region37
    $region36: #{tpu_custom_call.1} parent=1 // pred_region
      %v166 = vld [vmem:[#allocation2] sm:$0xff]
      %v167 = vld [vmem:[%s3] sm:$0xff]
      %169 = vset.pattern.permute.xlu0 0
      %170 = vperm.xlu0 %169, %v167
      %v171 = vpop.permute.xlu0 %170
      %v173 = vmul.f32 %v166, %v171
      %v174 = vpack.c.bf16 %v173, %v173
      %v175 = vld [vmem:[%s5] sm:$0xf]
      %v176 = vld [vmem:[%s5 + $0x4] sm:$0xf]
      %v177 = vld [vmem:[%s5 + $0x8] sm:$0xf]
      %v178 = vld [vmem:[%s5 + $0xc] sm:$0xf]
      %v179 = vld [vmem:[%s6] sm:$0x1]
      %v181 = vlaneseq
      %v182 = vshrl.u32 %v181, 7
      %v183 = vsub.s32 0, %v182
      %v184 = vrot.slane %v179, %v183
      %v190 = vunpack.c.l.b16 %v175
      %v191 = vunpack.c.l.b16 %v176
      %v192 = vunpack.c.l.b16 %v177
      %v193 = vunpack.c.l.b16 %v178
      %v194 = vpack.c.b16 %v191, %v190
      %v195 = vpack.c.b16 %v193, %v192
      %v199 = vsel %vm161, %v174, 0
      %201 = vmatprep.subr.bf16.mxu0 0
      %202 = vmatpush1.bf16.msra.mxu0 %v194
      %203 = vmatprep.subr.bf16.mxu0 0
      %204 = vmatpush1.bf16.msra.mxu0 %v195
      %205 = vmatprep.subr.bf16.mxu0 0
      %206 = vmatpush1.bf16.msra.mxu0 0
      %207 = vmatprep.subr.bf16.mxu0 0
      %208 = vmatpush1.bf16.msra.mxu0 0
      %209 = vmatprep.subr.bf16.mxu0 0
      %210 = vmatpush1.bf16.msra.mxu0 0
      %211 = vmatprep.subr.bf16.mxu0 0
      %212 = vmatpush1.bf16.msra.mxu0 0
      %213 = vmatprep.subr.bf16.mxu0 0
      %214 = vmatpush1.bf16.msra.mxu0 0
      %215 = vmatprep.subr.bf16.mxu0 0
      %216 = vmatpush1.bf16.msra.mxu0 0
      %217 = vmatprep.subr.bf16.mxu0 0
      %218 = vmatpush1.bf16.msra.mxu0 0
      %219 = vmatprep.subr.bf16.mxu0 0
      %220 = vmatpush1.bf16.msra.mxu0 0
      %221 = vmatprep.subr.bf16.mxu0 0
      %222 = vmatpush1.bf16.msra.mxu0 0
      %223 = vmatprep.subr.bf16.mxu0 0
      %224 = vmatpush1.bf16.msra.mxu0 0
      %225 = vmatprep.subr.bf16.mxu0 0
      %226 = vmatpush1.bf16.msra.mxu0 0
      %227 = vmatprep.subr.bf16.mxu0 0
      %228 = vmatpush1.bf16.msra.mxu0 0
      %229 = vmatprep.subr.bf16.mxu0 0
      %230 = vmatpush1.bf16.msra.mxu0 0
      %231 = vmatprep.subr.bf16.mxu0 0
      %232 = vmatpush1.bf16.msra.mxu0 0
      %233 = vmatprep.mubr.bf16.mxu0 0
      %234 = vmatmul.mubr.bf16.gmra.mrb[0].mxu0 %v199
      %v235 = vpop.f32.mrb[0].mxu0
      %v236 = vadd.f32 %v184, %v235
      %v237 = vpop.f32.mrb[0].mxu0
      %v238 = vpop.f32.mrb[0].mxu0
      %v239 = vpop.f32.mrb[0].mxu0
      %240 = vdwg.mxu0
      %241 = vst [vmem:[#allocation3] sm:$0xff] %v236
      %vm242 = vcmp.lt.s32.totalorder %v38, 8
      %v243 = vsel %vm242, %v236, -inf
      %244 = vmax.xlane.f32.xlu0 %v243
      %v245 = vpop.xlane.xlu0 %244
      %v246 = vsub.f32 %v243, %v245
      %v247 = vmul.f32 %v246, 1.442695
      %v248 = vpow.pop %v247
      %249 = vadd.xlane.f32.xlu0 %v248
      %v250 = vpop.xlane.xlu0 %249
      %v251 = vlog2.pop %v250
      %v252 = vmul.f32 %v251, 0.6931472
      %v253 = vadd.f32 %v245, %v252
      %v254 = vld [vmem:[%s4] sm:$0xff]
      %255 = vset.pattern.permute.xlu0 0
      %256 = vperm.xlu0 %255, %v254
      %v257 = vpop.permute.xlu0 %256
      %vm258 = vcmp.eq.s32.totalorder %v38, %v257
      %v259 = vsel %vm258, %v236, 0.0
      %260 = vadd.xlane.f32.xlu0 %v259
      %v261 = vpop.xlane.xlu0 %260
      %v262 = vlaneseq
      %v263 = vshrl.u32 %v262, 7
      %s264 = smul.u32 0, 8
      %v265 = vstv %s264
      %v266 = vadd.s32 %v263, %v265
      %vm267 = vcmp.lt.s32.totalorder %v266, 4
      %v268 = vsub.f32 %v253, %v261
      %v269 = vsel %vm267, %v268, 0.0
      %vm270 = vcmask 7168
      %271 = vst.msk [vmem:[%s8] sm:$0xff] %vm270, %v269
    $region37: #{tpu_custom_call.1} parent=1 // pred_fallthru
      _
    // Predicated region
    $region38: #{tpu_custom_call.1} parent=1 // pred_check
      _
    $region39: #{tpu_custom_call.1} parent=1 // pred_check_branch
      %273 = sbr.rel (0) target = $region41
    $region40: #{tpu_custom_call.1} parent=1 // pred_region
      %s275 = ssub.s32 128, 128
      %276 = vsyncadd [#allocation4], %s275
      %s278 = sshll.u32 [#allocation3], 4
      %s279 = int_to_ptr.vmem [resolvable:$true] %s278
      %281 = dma.vmem_to_hbm [thread:$0]  %s279, 128, %s7, [#allocation4]
    $region41: #{tpu_custom_call.1} parent=1 // pred_fallthru
      _
    // Predicated region
    $region42: #{tpu_custom_call.1} parent=1 // pred_check
      _
    $region43: #{tpu_custom_call.1} parent=1 // pred_check_branch
      %283 = sbr.rel (0) target = $region45
    $region44: #{tpu_custom_call.1} parent=1 // pred_region
      _
    $region45: #{tpu_custom_call.1} parent=1 // pred_fallthru
      _
    // Predicated region
    $region46: #{tpu_custom_call.1} parent=1 // pred_check
      _
    $region47: #{tpu_custom_call.1} parent=1 // pred_check_branch
      %285 = sbr.rel (0) target = $region49
    $region48: #{tpu_custom_call.1} parent=1 // pred_region
      %286 = dma.done [#allocation4], 128
    $region49: #{tpu_custom_call.1} parent=1 // pred_fallthru
      _
    // Predicated region
    $region50: #{tpu_custom_call.1} parent=1 // pred_check
      _
    $region51: #{tpu_custom_call.1} parent=1 // pred_check_branch
      %288 = sbr.rel (0) target = $region53
    $region52: #{tpu_custom_call.1} parent=1 // pred_region
      _
    $region53: #{tpu_custom_call.1} parent=1 // pred_fallthru
      _
    %289 = vsyncpa [#allocation4], 1

</llo_original>
